<compile_context>
chip_gen: v7x
topology: tpu7x:2x2x1
jax: 0.10.0
libtpu: 0.0.40
codegen_flags: <defaults>
</compile_context>

<pallas_src>
import functools

import jax
import jax.numpy as jnp
from jax.experimental import pallas as pl
from jax.experimental.pallas import tpu as pltpu

IN_FEATURES = 10
OUT_FEATURES = 2


def _round_up(n, m):
    return ((n + m - 1) // m) * m


def linear_kernel(x_ref, w_ref, b_ref, o_ref):
    # x_ref: (10, TB) VMEM  -- features on sublanes, batch on lanes (lane-dense)
    # w_ref: (2, 10)  SMEM  -- scalar weights
    # b_ref: (2,)     SMEM  -- scalar bias
    # o_ref: (2, TB)  VMEM  -- lane-dense output
    x = x_ref[...]                                        # (10, TB) f32
    rows = [x[k:k + 1, :] for k in range(IN_FEATURES)]    # each (1, TB)
    for j in range(OUT_FEATURES):                         # fully unrolled (2x10)
        acc = rows[0] * w_ref[j, 0]
        for k in range(1, IN_FEATURES):
            acc = acc + rows[k] * w_ref[j, k]
        o_ref[j:j + 1, :] = acc + b_ref[j]


@functools.partial(jax.jit, static_argnames=("block_batch",))
def my_model_forward(x, weight, bias, *, block_batch=2048):
    """Equivalent of PyTorch nn.Linear(10, 2): y = x @ weight.T + bias.

    x:      (B, 10) float32
    weight: (2, 10) float32  (PyTorch nn.Linear convention)
    bias:   (2,)    float32
    returns (B, 2)  float32
    """
    B = x.shape[0]

    # Lane-dense layout: features on sublanes, batch on lanes.
    x_t = x.astype(jnp.float32).T                         # (10, B)

    # Batch tile: multiple of 128 lanes; small batches collapse to one tile.
    tb = block_batch if B >= block_batch else _round_up(max(B, 1), 128)
    b_pad = _round_up(B, tb)
    if b_pad != B:
        x_t = jnp.pad(x_t, ((0, 0), (0, b_pad - B)))      # zero-pad tail tile

    grid = (b_pad // tb,)

    y_t = pl.pallas_call(
        linear_kernel,
        out_shape=jax.ShapeDtypeStruct((OUT_FEATURES, b_pad), jnp.float32),
        grid=grid,
        in_specs=[
            # x tile: (10, TB); 10 == full sublane extent, TB % 128 == 0.
            pl.BlockSpec((IN_FEATURES, tb), lambda i: (0, i)),
            # Tiny weight/bias stay resident in SMEM for the whole grid.
            pl.BlockSpec(memory_space=pltpu.MemorySpace.SMEM),
            pl.BlockSpec(memory_space=pltpu.MemorySpace.SMEM),
        ],
        out_specs=pl.BlockSpec((OUT_FEATURES, tb), lambda i: (0, i)),
        compiler_params=pltpu.CompilerParams(
            dimension_semantics=("parallel",),  # megacore sharding on v7x
        ),
    )(x_t, weight, bias)

    return y_t[:, :B].T                                   # (B, 2)


if __name__ == "__main__":
    key = jax.random.PRNGKey(0)
    kx, kw, kb = jax.random.split(key, 3)

    # Deterministic synthetic parameters (nn.Linear(10, 2) shapes).
    weight = jax.random.normal(kw, (OUT_FEATURES, IN_FEATURES), dtype=jnp.float32) * 0.1
    bias = jax.random.normal(kb, (OUT_FEATURES,), dtype=jnp.float32) * 0.1

    # Small batch input consistent with the forward pass.
    x = jax.random.normal(kx, (2, IN_FEATURES), dtype=jnp.float32)

    out = my_model_forward(x, weight, bias)
    out = jax.block_until_ready(out)

    ref = x @ weight.T + bias
    assert out.shape == (2, OUT_FEATURES)
    assert jnp.allclose(out, ref, atol=1e-5, rtol=1e-5), "mismatch vs reference"

    # Also exercise the tiled path (grid > 1, B not a multiple of the tile).
    xb = jax.random.normal(kx, (4103, IN_FEATURES), dtype=jnp.float32)
    outb = jax.block_until_ready(my_model_forward(xb, weight, bias))
    refb = xb @ weight.T + bias
    assert jnp.allclose(outb, refb, atol=1e-5, rtol=1e-5), "mismatch vs reference (tiled)"

    print("KERNEL_OK")
</pallas_src>

<mosaic_0001>
module attributes {stable_mosaic.version = 11 : i64} {
  func.func @linear_kernel(%arg0: i32, %arg1: memref<10x128xf32, #tpu.memory_space<vmem>>, %arg2: memref<2x10xf32, #tpu.memory_space<smem>>, %arg3: memref<2xf32, #tpu.memory_space<smem>>, %arg4: memref<2x128xf32, #tpu.memory_space<vmem>>) attributes {dimension_semantics = [#tpu.dimension_semantics<parallel>], iteration_bounds = array<i64: 1>, scalar_prefetch = 0 : i64, scratch_operands = 0 : i64, tpu.core_type = #tpu.core_type<tc>, window_params = [{transform_indices = @transform_0, window_bounds = array<i64: 10, 128>}, {transform_indices = @transform_1, window_bounds = array<i64: 2, 10>}, {transform_indices = @transform_2, window_bounds = array<i64: 2>}, {transform_indices = @transform_3, window_bounds = array<i64: 2, 128>}]} {
    %c0 = arith.constant 0 : index
    %c0_0 = arith.constant 0 : index
    %0 = vector.load %arg1[%c0, %c0_0] : memref<10x128xf32, #tpu.memory_space<vmem>>, vector<10x128xf32>
    %1 = vector.extract_strided_slice %0 {offsets = [0, 0], sizes = [1, 128], strides = [1, 1]} : vector<10x128xf32> to vector<1x128xf32>
    %2 = vector.extract_strided_slice %0 {offsets = [1, 0], sizes = [1, 128], strides = [1, 1]} : vector<10x128xf32> to vector<1x128xf32>
    %3 = vector.extract_strided_slice %0 {offsets = [2, 0], sizes = [1, 128], strides = [1, 1]} : vector<10x128xf32> to vector<1x128xf32>
    %4 = vector.extract_strided_slice %0 {offsets = [3, 0], sizes = [1, 128], strides = [1, 1]} : vector<10x128xf32> to vector<1x128xf32>
    %5 = vector.extract_strided_slice %0 {offsets = [4, 0], sizes = [1, 128], strides = [1, 1]} : vector<10x128xf32> to vector<1x128xf32>
    %6 = vector.extract_strided_slice %0 {offsets = [5, 0], sizes = [1, 128], strides = [1, 1]} : vector<10x128xf32> to vector<1x128xf32>
    %7 = vector.extract_strided_slice %0 {offsets = [6, 0], sizes = [1, 128], strides = [1, 1]} : vector<10x128xf32> to vector<1x128xf32>
    %8 = vector.extract_strided_slice %0 {offsets = [7, 0], sizes = [1, 128], strides = [1, 1]} : vector<10x128xf32> to vector<1x128xf32>
    %9 = vector.extract_strided_slice %0 {offsets = [8, 0], sizes = [1, 128], strides = [1, 1]} : vector<10x128xf32> to vector<1x128xf32>
    %10 = vector.extract_strided_slice %0 {offsets = [9, 0], sizes = [1, 128], strides = [1, 1]} : vector<10x128xf32> to vector<1x128xf32>
    %c0_1 = arith.constant 0 : index
    %c0_2 = arith.constant 0 : index
    %11 = memref.load %arg2[%c0_1, %c0_2] : memref<2x10xf32, #tpu.memory_space<smem>>
    %12 = vector.broadcast %11 : f32 to vector<1x128xf32>
    %13 = arith.mulf %1, %12 : vector<1x128xf32>
    %c0_3 = arith.constant 0 : index
    %c1 = arith.constant 1 : index
    %14 = memref.load %arg2[%c0_3, %c1] : memref<2x10xf32, #tpu.memory_space<smem>>
    %15 = vector.broadcast %14 : f32 to vector<1x128xf32>
    %16 = arith.mulf %2, %15 : vector<1x128xf32>
    %17 = arith.addf %13, %16 : vector<1x128xf32>
    %c0_4 = arith.constant 0 : index
    %c2 = arith.constant 2 : index
    %18 = memref.load %arg2[%c0_4, %c2] : memref<2x10xf32, #tpu.memory_space<smem>>
    %19 = vector.broadcast %18 : f32 to vector<1x128xf32>
    %20 = arith.mulf %3, %19 : vector<1x128xf32>
    %21 = arith.addf %17, %20 : vector<1x128xf32>
    %c0_5 = arith.constant 0 : index
    %c3 = arith.constant 3 : index
    %22 = memref.load %arg2[%c0_5, %c3] : memref<2x10xf32, #tpu.memory_space<smem>>
    %23 = vector.broadcast %22 : f32 to vector<1x128xf32>
    %24 = arith.mulf %4, %23 : vector<1x128xf32>
    %25 = arith.addf %21, %24 : vector<1x128xf32>
    %c0_6 = arith.constant 0 : index
    %c4 = arith.constant 4 : index
    %26 = memref.load %arg2[%c0_6, %c4] : memref<2x10xf32, #tpu.memory_space<smem>>
    %27 = vector.broadcast %26 : f32 to vector<1x128xf32>
    %28 = arith.mulf %5, %27 : vector<1x128xf32>
    %29 = arith.addf %25, %28 : vector<1x128xf32>
    %c0_7 = arith.constant 0 : index
    %c5 = arith.constant 5 : index
    %30 = memref.load %arg2[%c0_7, %c5] : memref<2x10xf32, #tpu.memory_space<smem>>
    %31 = vector.broadcast %30 : f32 to vector<1x128xf32>
    %32 = arith.mulf %6, %31 : vector<1x128xf32>
    %33 = arith.addf %29, %32 : vector<1x128xf32>
    %c0_8 = arith.constant 0 : index
    %c6 = arith.constant 6 : index
    %34 = memref.load %arg2[%c0_8, %c6] : memref<2x10xf32, #tpu.memory_space<smem>>
    %35 = vector.broadcast %34 : f32 to vector<1x128xf32>
    %36 = arith.mulf %7, %35 : vector<1x128xf32>
    %37 = arith.addf %33, %36 : vector<1x128xf32>
    %c0_9 = arith.constant 0 : index
    %c7 = arith.constant 7 : index
    %38 = memref.load %arg2[%c0_9, %c7] : memref<2x10xf32, #tpu.memory_space<smem>>
    %39 = vector.broadcast %38 : f32 to vector<1x128xf32>
    %40 = arith.mulf %8, %39 : vector<1x128xf32>
    %41 = arith.addf %37, %40 : vector<1x128xf32>
    %c0_10 = arith.constant 0 : index
    %c8 = arith.constant 8 : index
    %42 = memref.load %arg2[%c0_10, %c8] : memref<2x10xf32, #tpu.memory_space<smem>>
    %43 = vector.broadcast %42 : f32 to vector<1x128xf32>
    %44 = arith.mulf %9, %43 : vector<1x128xf32>
    %45 = arith.addf %41, %44 : vector<1x128xf32>
    %c0_11 = arith.constant 0 : index
    %c9 = arith.constant 9 : index
    %46 = memref.load %arg2[%c0_11, %c9] : memref<2x10xf32, #tpu.memory_space<smem>>
    %47 = vector.broadcast %46 : f32 to vector<1x128xf32>
    %48 = arith.mulf %10, %47 : vector<1x128xf32>
    %49 = arith.addf %45, %48 : vector<1x128xf32>
    %c0_12 = arith.constant 0 : index
    %50 = memref.load %arg3[%c0_12] : memref<2xf32, #tpu.memory_space<smem>>
    %51 = vector.broadcast %50 : f32 to vector<1x128xf32>
    %52 = arith.addf %49, %51 : vector<1x128xf32>
    %c0_13 = arith.constant 0 : index
    %c0_14 = arith.constant 0 : index
    %53 = vector.load %arg4[%c0_13, %c0_14] : memref<2x128xf32, #tpu.memory_space<vmem>>, vector<1x128xf32>
    tpu.vector_store %arg4[%c0_13, %c0_14], %52 {strides = array<i32>} : memref<2x128xf32, #tpu.memory_space<vmem>>, vector<1x128xf32>,
    %c1_15 = arith.constant 1 : index
    %c0_16 = arith.constant 0 : index
    %54 = memref.load %arg2[%c1_15, %c0_16] : memref<2x10xf32, #tpu.memory_space<smem>>
    %55 = vector.broadcast %54 : f32 to vector<1x128xf32>
    %56 = arith.mulf %1, %55 : vector<1x128xf32>
    %c1_17 = arith.constant 1 : index
    %c1_18 = arith.constant 1 : index
    %57 = memref.load %arg2[%c1_17, %c1_18] : memref<2x10xf32, #tpu.memory_space<smem>>
    %58 = vector.broadcast %57 : f32 to vector<1x128xf32>
    %59 = arith.mulf %2, %58 : vector<1x128xf32>
    %60 = arith.addf %56, %59 : vector<1x128xf32>
    %c1_19 = arith.constant 1 : index
    %c2_20 = arith.constant 2 : index
    %61 = memref.load %arg2[%c1_19, %c2_20] : memref<2x10xf32, #tpu.memory_space<smem>>
    %62 = vector.broadcast %61 : f32 to vector<1x128xf32>
    %63 = arith.mulf %3, %62 : vector<1x128xf32>
    %64 = arith.addf %60, %63 : vector<1x128xf32>
    %c1_21 = arith.constant 1 : index
    %c3_22 = arith.constant 3 : index
    %65 = memref.load %arg2[%c1_21, %c3_22] : memref<2x10xf32, #tpu.memory_space<smem>>
    %66 = vector.broadcast %65 : f32 to vector<1x128xf32>
    %67 = arith.mulf %4, %66 : vector<1x128xf32>
    %68 = arith.addf %64, %67 : vector<1x128xf32>
    %c1_23 = arith.constant 1 : index
    %c4_24 = arith.constant 4 : index
    %69 = memref.load %arg2[%c1_23, %c4_24] : memref<2x10xf32, #tpu.memory_space<smem>>
    %70 = vector.broadcast %69 : f32 to vector<1x128xf32>
    %71 = arith.mulf %5, %70 : vector<1x128xf32>
    %72 = arith.addf %68, %71 : vector<1x128xf32>
    %c1_25 = arith.constant 1 : index
    %c5_26 = arith.constant 5 : index
    %73 = memref.load %arg2[%c1_25, %c5_26] : memref<2x10xf32, #tpu.memory_space<smem>>
    %74 = vector.broadcast %73 : f32 to vector<1x128xf32>
    %75 = arith.mulf %6, %74 : vector<1x128xf32>
    %76 = arith.addf %72, %75 : vector<1x128xf32>
    %c1_27 = arith.constant 1 : index
    %c6_28 = arith.constant 6 : index
    %77 = memref.load %arg2[%c1_27, %c6_28] : memref<2x10xf32, #tpu.memory_space<smem>>
    %78 = vector.broadcast %77 : f32 to vector<1x128xf32>
    %79 = arith.mulf %7, %78 : vector<1x128xf32>
    %80 = arith.addf %76, %79 : vector<1x128xf32>
    %c1_29 = arith.constant 1 : index
    %c7_30 = arith.constant 7 : index
    %81 = memref.load %arg2[%c1_29, %c7_30] : memref<2x10xf32, #tpu.memory_space<smem>>
    %82 = vector.broadcast %81 : f32 to vector<1x128xf32>
    %83 = arith.mulf %8, %82 : vector<1x128xf32>
    %84 = arith.addf %80, %83 : vector<1x128xf32>
    %c1_31 = arith.constant 1 : index
    %c8_32 = arith.constant 8 : index
    %85 = memref.load %arg2[%c1_31, %c8_32] : memref<2x10xf32, #tpu.memory_space<smem>>
    %86 = vector.broadcast %85 : f32 to vector<1x128xf32>
    %87 = arith.mulf %9, %86 : vector<1x128xf32>
    %88 = arith.addf %84, %87 : vector<1x128xf32>
    %c1_33 = arith.constant 1 : index
    %c9_34 = arith.constant 9 : index
    %89 = memref.load %arg2[%c1_33, %c9_34] : memref<2x10xf32, #tpu.memory_space<smem>>
    %90 = vector.broadcast %89 : f32 to vector<1x128xf32>
    %91 = arith.mulf %10, %90 : vector<1x128xf32>
    %92 = arith.addf %88, %91 : vector<1x128xf32>
    %c1_35 = arith.constant 1 : index
    %93 = memref.load %arg3[%c1_35] : memref<2xf32, #tpu.memory_space<smem>>
    %94 = vector.broadcast %93 : f32 to vector<1x128xf32>
    %95 = arith.addf %92, %94 : vector<1x128xf32>
    %c1_36 = arith.constant 1 : index
    %c0_37 = arith.constant 0 : index
    %96 = vector.load %arg4[%c1_36, %c0_37] : memref<2x128xf32, #tpu.memory_space<vmem>>, vector<1x128xf32>
    tpu.vector_store %arg4[%c1_36, %c0_37], %95 {strides = array<i32>} : memref<2x128xf32, #tpu.memory_space<vmem>>, vector<1x128xf32>,
    return
  }
  func.func @transform_0(%arg0: i32) -> (i32, i32) {
    %c0_i32 = arith.constant 0 : i32
    %c0_i32_0 = arith.constant 0 : i32
    return %c0_i32, %arg0 : i32, i32
  }
  func.func @transform_1(%arg0: i32) -> (i32, i32) {
    %c0_i32 = arith.constant 0 : i32
    %c0_i32_0 = arith.constant 0 : i32
    %c0_i32_1 = arith.constant 0 : i32
    return %c0_i32, %c0_i32_0 : i32, i32
  }
  func.func @transform_2(%arg0: i32) -> i32 {
    %c0_i32 = arith.constant 0 : i32
    %c0_i32_0 = arith.constant 0 : i32
    return %c0_i32 : i32
  }
  func.func @transform_3(%arg0: i32) -> (i32, i32) {
    %c0_i32 = arith.constant 0 : i32
    %c0_i32_0 = arith.constant 0 : i32
    return %c0_i32, %arg0 : i32, i32
  }
}

</mosaic_0001>

<llo_original>
// kernel: my_model_forward.1
$region0: #{my_model_forward.1}
  #allocation0 [shape = 'u32[]', space=smem, size = 0x4, offset = 0x4, fixed_abs, tag = 'smem constant byte address 0x4 - core index']
  #allocation1 [shape = 'u32[144,128]{1,0:T(1,128)}', space=vmem, size = 0x12000, scoped, tag = 'internal scratch']
  %s0 = inlined_call_operand.vmem [shape: f32[10,128], index: 0, kind: input, shape index: {}]
  %s1 = inlined_call_operand.vmem [shape: f32[2,10], index: 1, kind: input, shape index: {}]
  %s2 = inlined_call_operand.vmem [shape: f32[2], index: 2, kind: input, shape index: {}]
  %s3 = inlined_call_operand.vmem [shape: f32[2,128], index: 3, kind: output, shape index: {}]
  %s4 = sld [smem:[#allocation0]]
  $region30: #{my_model_forward.1} parent=0
    _
  %s6 = ssub.s32 1, %s4
  %s7 = scalar_select 0, %s6, %s4
  $region1: #{my_model_forward.1} parent=0
    #allocation2 [shape = 'u8[1024]{0}', space=smem, size = 0x400, scoped, tag = 'input window, operand 1, single buffered']
    #allocation3 [shape = 's32[1]{0}', space=sflag, size = 0x4, scoped, tag = 'scoped memory for my_model_forward.1']
    #allocation4 [shape = 'u8[512]{0}', space=smem, size = 0x200, scoped, tag = 'input window, operand 2, single buffered']
    #allocation5 [shape = 's32[1]{0}', space=sflag, size = 0x4, scoped, tag = 'scoped memory for my_model_forward.1']
    %8 = vsyncpa [#allocation3], 0
    %9 = vsyncpa [#allocation5], 0
    // Predicated region
    $region2: #{my_model_forward.1} parent=1 // pred_check
      _
    $region3: #{my_model_forward.1} parent=1 // pred_check_branch
      %11 = sbr.rel (0) target = $region5
    $region4: #{my_model_forward.1} parent=1 // pred_region
      _
    $region5: #{my_model_forward.1} parent=1 // pred_fallthru
      _
    // Predicated region
    $region6: #{my_model_forward.1} parent=1 // pred_check
      _
    $region7: #{my_model_forward.1} parent=1 // pred_check_branch
      %13 = sbr.rel (0) target = $region9
    $region8: #{my_model_forward.1} parent=1 // pred_region
      %s15 = ssub.s32 32, 32
      %16 = vsyncadd [#allocation3], %s15
      %s18 = sshll.u32 %s1, 4
      %s19 = int_to_ptr.vmem [resolvable:$true] %s18
      %21 = dma.vmem_to_smem %s19, 32, [#allocation2], [#allocation3]
    $region9: #{my_model_forward.1} parent=1 // pred_fallthru
      _
    // Predicated region
    $region10: #{my_model_forward.1} parent=1 // pred_check
      _
    $region11: #{my_model_forward.1} parent=1 // pred_check_branch
      %23 = sbr.rel (0) target = $region13
    $region12: #{my_model_forward.1} parent=1 // pred_region
      %s25 = ssub.s32 16, 16
      %26 = vsyncadd [#allocation5], %s25
      %s28 = sshll.u32 %s2, 4
      %s29 = int_to_ptr.vmem [resolvable:$true] %s28
      %31 = dma.vmem_to_smem %s29, 16, [#allocation4], [#allocation5]
    $region13: #{my_model_forward.1} parent=1 // pred_fallthru
      _
    // Predicated region
    $region14: #{my_model_forward.1} parent=1 // pred_check
      _
    $region15: #{my_model_forward.1} parent=1 // pred_check_branch
      %33 = sbr.rel (0) target = $region17
    $region16: #{my_model_forward.1} parent=1 // pred_region
      %34 = dma.done [#allocation3], 32
    $region17: #{my_model_forward.1} parent=1 // pred_fallthru
      _
    // Predicated region
    $region18: #{my_model_forward.1} parent=1 // pred_check
      _
    $region19: #{my_model_forward.1} parent=1 // pred_check_branch
      %36 = sbr.rel (0) target = $region21
    $region20: #{my_model_forward.1} parent=1 // pred_region
      %37 = dma.done [#allocation5], 16
    $region21: #{my_model_forward.1} parent=1 // pred_fallthru
      _
    %38 = sfence
    %v39 = vld [vmem:[%s0] sm:$0xff]
    %v40 = vld [vmem:[%s0 + $0x8] sm:$0x3]
    %s41 = sld [smem:[#allocation2]]
    %v42 = vstv %s41
    %v43 = vmul.f32 %v39, %v42
    %s44 = sld [smem:[#allocation2 + $0x1]]
    %v45 = vstv %s44
    %v46 = vmul.f32 %v39, %v45
    %v48 = vrot.slane %v46, 1
    %v50 = vadd.f32 %v43, %v48
    %s51 = sld [smem:[#allocation2 + $0x2]]
    %v52 = vstv %s51
    %v53 = vmul.f32 %v39, %v52
    %v55 = vrot.slane %v53, 2
    %v57 = vadd.f32 %v50, %v55
    %s58 = sld [smem:[#allocation2 + $0x3]]
    %v59 = vstv %s58
    %v60 = vmul.f32 %v39, %v59
    %v62 = vrot.slane %v60, 3
    %v64 = vadd.f32 %v57, %v62
    %s65 = sld [smem:[#allocation2 + $0x4]]
    %v66 = vstv %s65
    %v67 = vmul.f32 %v39, %v66
    %v69 = vrot.slane %v67, 4
    %v71 = vadd.f32 %v64, %v69
    %s72 = sld [smem:[#allocation2 + $0x5]]
    %v73 = vstv %s72
    %v74 = vmul.f32 %v39, %v73
    %v76 = vrot.slane %v74, 5
    %v78 = vadd.f32 %v71, %v76
    %s79 = sld [smem:[#allocation2 + $0x6]]
    %v80 = vstv %s79
    %v81 = vmul.f32 %v39, %v80
    %v83 = vrot.slane %v81, 6
    %v85 = vadd.f32 %v78, %v83
    %s86 = sld [smem:[#allocation2 + $0x7]]
    %v87 = vstv %s86
    %v88 = vmul.f32 %v39, %v87
    %v90 = vrot.slane %v88, 7
    %v92 = vadd.f32 %v85, %v90
    %s93 = sld [smem:[#allocation2 + $0x8]]
    %v94 = vstv %s93
    %v95 = vmul.f32 %v40, %v94
    %v96 = vadd.f32 %v92, %v95
    %s97 = sld [smem:[#allocation2 + $0x9]]
    %v98 = vstv %s97
    %v99 = vmul.f32 %v40, %v98
    %v101 = vrot.slane %v99, 1
    %v103 = vadd.f32 %v96, %v101
    %s104 = sld [smem:[#allocation4]]
    %v105 = vstv %s104
    %v106 = vadd.f32 %v103, %v105
    %107 = vst [vmem:[%s3] sm:$0x1] %v106
    %s108 = sld [smem:[#allocation2 + $0x80]]
    %v109 = vstv %s108
    %v110 = vmul.f32 %v39, %v109
    %s111 = sld [smem:[#allocation2 + $0x81]]
    %v112 = vstv %s111
    %v113 = vmul.f32 %v39, %v112
    %v115 = vrot.slane %v113, 1
    %v117 = vadd.f32 %v110, %v115
    %s118 = sld [smem:[#allocation2 + $0x82]]
    %v119 = vstv %s118
    %v120 = vmul.f32 %v39, %v119
    %v122 = vrot.slane %v120, 2
    %v124 = vadd.f32 %v117, %v122
    %s125 = sld [smem:[#allocation2 + $0x83]]
    %v126 = vstv %s125
    %v127 = vmul.f32 %v39, %v126
    %v129 = vrot.slane %v127, 3
    %v131 = vadd.f32 %v124, %v129
    %s132 = sld [smem:[#allocation2 + $0x84]]
    %v133 = vstv %s132
    %v134 = vmul.f32 %v39, %v133
    %v136 = vrot.slane %v134, 4
    %v138 = vadd.f32 %v131, %v136
    %s139 = sld [smem:[#allocation2 + $0x85]]
    %v140 = vstv %s139
    %v141 = vmul.f32 %v39, %v140
    %v143 = vrot.slane %v141, 5
    %v145 = vadd.f32 %v138, %v143
    %s146 = sld [smem:[#allocation2 + $0x86]]
    %v147 = vstv %s146
    %v148 = vmul.f32 %v39, %v147
    %v150 = vrot.slane %v148, 6
    %v152 = vadd.f32 %v145, %v150
    %s153 = sld [smem:[#allocation2 + $0x87]]
    %v154 = vstv %s153
    %v155 = vmul.f32 %v39, %v154
    %v157 = vrot.slane %v155, 7
    %v159 = vadd.f32 %v152, %v157
    %s160 = sld [smem:[#allocation2 + $0x88]]
    %v161 = vstv %s160
    %v162 = vmul.f32 %v40, %v161
    %v163 = vadd.f32 %v159, %v162
    %s164 = sld [smem:[#allocation2 + $0x89]]
    %v165 = vstv %s164
    %v166 = vmul.f32 %v40, %v165
    %v168 = vrot.slane %v166, 1
    %v170 = vadd.f32 %v163, %v168
    %s171 = sld [smem:[#allocation4 + $0x1]]
    %v172 = vstv %s171
    %v173 = vadd.f32 %v170, %v172
    %174 = vst [vmem:[%s3 + $0x1] sm:$0x1] %v173
    // Predicated region
    $region22: #{my_model_forward.1} parent=1 // pred_check
      _
    $region23: #{my_model_forward.1} parent=1 // pred_check_branch
      %176 = sbr.rel (0) target = $region25
    $region24: #{my_model_forward.1} parent=1 // pred_region
      _
    $region25: #{my_model_forward.1} parent=1 // pred_fallthru
      _
    // Predicated region
    $region26: #{my_model_forward.1} parent=1 // pred_check
      _
    $region27: #{my_model_forward.1} parent=1 // pred_check_branch
      %178 = sbr.rel (0) target = $region29
    $region28: #{my_model_forward.1} parent=1 // pred_region
      _
    $region29: #{my_model_forward.1} parent=1 // pred_fallthru
      _
    %179 = vsyncpa [#allocation3], 1
    %180 = vsyncpa [#allocation5], 1

</llo_original>
